<compile_context>
chip_gen: v7x
topology: tpu7x:2x2x1
jax: 0.10.0
libtpu: 0.0.40
codegen_flags: <defaults>
</compile_context>

<pallas_src>
import functools

import jax
import jax.numpy as jnp
from jax import lax
from jax.experimental import pallas as pl
from jax.experimental.pallas import tpu as pltpu

VIT_BASE_HIDDEN_SIZE = 768  # module constant (Conv2d out_channels)


# ----------------------------- kernel ----------------------------------------
def embedded_patches_kernel(p_ref, w_ref, b_ref, o_ref):
    # p_ref: (TILE_M, K)   bf16 patch rows (one row tile per grid step)
    # w_ref: (K, 768)      bf16 flattened conv weight   (resident across steps)
    # b_ref: (1, 768)      f32 bias                     (resident across steps)
    # o_ref: (TILE_M, 768) f32 output tile (lane-dense: 768 = 6 * 128)
    o_ref[...] = (
        jnp.dot(p_ref[...], w_ref[...], preferred_element_type=jnp.float32)
        + b_ref[...]
    )


# ----------------------------- wrapper ----------------------------------------
def embedded_patches(x, conv_w, conv_b, *, patch, tile_m=512):
    """Pallas forward of EmbeddedPatches.

    x:       (N, C, H, W) float32, NCHW (PyTorch convention)
    conv_w:  (768, C, P, P) float32, torch OIHW Conv2d weight
    conv_b:  (768,) float32 Conv2d bias
    returns: (N, (H//P)*(W//P), 768) float32 == patcher(x).flatten(2,3).permute(0,2,1)
    """
    n, c, hgt, wid = x.shape
    hp, wp = hgt // patch, wid // patch
    k = c * patch * patch
    rows = n * hp * wp

    # Layout-only glue (no FLOPs): non-overlapping PxP patches as rows, K axis
    # ordered (c, ph, pw) to match the OIHW weight flatten below.  Cast to bf16
    # here so the kernel's dominant input DMA stream is half-width.
    p = x.reshape(n, c, hp, patch, wp, patch)
    p = p.transpose(0, 2, 4, 1, 3, 5).reshape(rows, k).astype(jnp.bfloat16)

    # Weight cast to bf16 once at the call boundary; bias stays f32 (accum dtype).
    w_flat = conv_w.reshape(VIT_BASE_HIDDEN_SIZE, k).T.astype(jnp.bfloat16)
    bias = conv_b.reshape(1, VIT_BASE_HIDDEN_SIZE).astype(jnp.float32)

    # Row tile: 512 (256-aligned for v6e/v7x MXU, amortizes grid-step overhead),
    # clamped to the full row count for small inputs (full-dim blocks are always
    # legal).  Partial last tiles are padded by Pallas and masked on writeback.
    tm = tile_m if rows >= tile_m else rows
    grid_m = pl.cdiv(rows, tm)

    out = pl.pallas_call(
        embedded_patches_kernel,
        out_shape=jax.ShapeDtypeStruct((rows, VIT_BASE_HIDDEN_SIZE), jnp.float32),
        grid=(grid_m,),
        in_specs=[
            pl.BlockSpec((tm, k), lambda i: (i, 0)),                       # row tile
            pl.BlockSpec((k, VIT_BASE_HIDDEN_SIZE), lambda i: (0, 0)),     # resident
            pl.BlockSpec((1, VIT_BASE_HIDDEN_SIZE), lambda i: (0, 0)),     # resident
        ],
        out_specs=pl.BlockSpec((tm, VIT_BASE_HIDDEN_SIZE), lambda i: (i, 0)),
        compiler_params=pltpu.CompilerParams(
            # Row tiles are independent -> shard across v7x's 2 TCs; no-op on 1-TC chips.
            dimension_semantics=("parallel",),
            # Explicit scoped-VMEM budget: double-buffered in/out tiles + weight fit
            # with large headroom on every generation (v5e/v6e/v7x).
            vmem_limit_bytes=32 * 1024 * 1024,
        ),
    )(p, w_flat, bias)

    # Free row-major reshape: (N*NP, 768) -> (N, NP, 768).
    return out.reshape(n, hp * wp, VIT_BASE_HIDDEN_SIZE)


# ----------------------------- main -------------------------------------------
if __name__ == "__main__":
    key = jax.random.PRNGKey(0)
    kx, kw, kb = jax.random.split(key, 3)

    # Small shapes consistent with the module: colors=4, patch size ("batches")=8,
    # 16x16 input -> num_patches = (16//8)**2 = 4, rows = 8, K = 256.
    N, COLORS, PATCH, RES = 2, 4, 8, 16
    x = jax.random.normal(kx, (N, COLORS, RES, RES), dtype=jnp.float32)
    conv_w = (0.02 * jax.random.normal(
        kw, (VIT_BASE_HIDDEN_SIZE, COLORS, PATCH, PATCH))).astype(jnp.float32)
    conv_b = (0.02 * jax.random.normal(
        kb, (VIT_BASE_HIDDEN_SIZE,))).astype(jnp.float32)

    fwd = jax.jit(functools.partial(embedded_patches, patch=PATCH))
    out = jax.block_until_ready(fwd(x, conv_w, conv_b))
    assert out.shape == (N, (RES // PATCH) ** 2, VIT_BASE_HIDDEN_SIZE), out.shape
    assert out.dtype == jnp.float32, out.dtype
    assert bool(jnp.all(jnp.isfinite(out))), "non-finite output"

    # Reference = the torch Conv2d(k=stride=P) + flatten(2,3) + permute semantics,
    # computed with the SAME bf16 operand quantization the kernel uses (f32 accum
    # via HIGHEST precision), so the comparison is tight and validates the kernel
    # rather than the bf16 rounding of the inputs.
    x_q = x.astype(jnp.bfloat16).astype(jnp.float32)
    w_q = conv_w.astype(jnp.bfloat16).astype(jnp.float32)
    ref = lax.conv_general_dilated(
        x_q, w_q, window_strides=(PATCH, PATCH), padding="VALID",
        dimension_numbers=("NCHW", "OIHW", "NCHW"),
        precision=lax.Precision.HIGHEST)
    ref = ref.reshape(N, VIT_BASE_HIDDEN_SIZE, -1).transpose(0, 2, 1) + conv_b

    max_err = float(jnp.max(jnp.abs(out - ref)))
    assert jnp.allclose(out, ref, atol=1e-2, rtol=1e-2), max_err
    print("KERNEL_OK")
</pallas_src>

<mosaic_0001>
module attributes {stable_mosaic.version = 11 : i64} {
  func.func @embedded_patches_kernel(%arg0: i32, %arg1: memref<8x256xbf16, #tpu.memory_space<vmem>>, %arg2: memref<256x768xbf16, #tpu.memory_space<vmem>>, %arg3: memref<1x768xf32, #tpu.memory_space<vmem>>, %arg4: memref<8x768xf32, #tpu.memory_space<vmem>>) attributes {dimension_semantics = [#tpu.dimension_semantics<parallel>], iteration_bounds = array<i64: 1>, scalar_prefetch = 0 : i64, scratch_operands = 0 : i64, tpu.core_type = #tpu.core_type<tc>, window_params = [{transform_indices = @transform_0, window_bounds = array<i64: 8, 256>}, {pipeline_mode = #tpu.pipeline_mode<synchronous>, transform_indices = @transform_1, window_bounds = array<i64: 256, 768>}, {pipeline_mode = #tpu.pipeline_mode<synchronous>, transform_indices = @transform_2, window_bounds = array<i64: 1, 768>}, {transform_indices = @transform_3, window_bounds = array<i64: 8, 768>}]} {
    %c0 = arith.constant 0 : index
    %c0_0 = arith.constant 0 : index
    %0 = vector.load %arg1[%c0, %c0_0] : memref<8x256xbf16, #tpu.memory_space<vmem>>, vector<8x256xbf16>
    %c0_1 = arith.constant 0 : index
    %c0_2 = arith.constant 0 : index
    %1 = vector.load %arg2[%c0_1, %c0_2] : memref<256x768xbf16, #tpu.memory_space<vmem>>, vector<256x768xbf16>
    %cst = arith.constant dense<0.000000e+00> : vector<8x768xf32>
    %2 = tpu.matmul %0, %1, %cst {dimension_numbers = #tpu.dot_dimension_numbers<[1], [0], [0], [1], [0, 0, 1, 1], [], []>} : vector<8x256xbf16>, vector<256x768xbf16>, vector<8x768xf32> -> vector<8x768xf32>
    %c0_3 = arith.constant 0 : index
    %c0_4 = arith.constant 0 : index
    %3 = vector.load %arg3[%c0_3, %c0_4] : memref<1x768xf32, #tpu.memory_space<vmem>>, vector<1x768xf32>
    %4 = vector.broadcast %3 : vector<1x768xf32> to vector<8x768xf32>
    %5 = arith.addf %2, %4 : vector<8x768xf32>
    %c0_5 = arith.constant 0 : index
    %c0_6 = arith.constant 0 : index
    %6 = vector.load %arg4[%c0_5, %c0_6] : memref<8x768xf32, #tpu.memory_space<vmem>>, vector<8x768xf32>
    tpu.vector_store %arg4[%c0_5, %c0_6], %5 {strides = array<i32>} : memref<8x768xf32, #tpu.memory_space<vmem>>, vector<8x768xf32>,
    return
  }
  func.func @transform_0(%arg0: i32) -> (i32, i32) {
    %c0_i32 = arith.constant 0 : i32
    %c0_i32_0 = arith.constant 0 : i32
    return %arg0, %c0_i32 : i32, i32
  }
  func.func @transform_1(%arg0: i32) -> (i32, i32) {
    %c0_i32 = arith.constant 0 : i32
    %c0_i32_0 = arith.constant 0 : i32
    %c0_i32_1 = arith.constant 0 : i32
    return %c0_i32, %c0_i32_0 : i32, i32
  }
  func.func @transform_2(%arg0: i32) -> (i32, i32) {
    %c0_i32 = arith.constant 0 : i32
    %c0_i32_0 = arith.constant 0 : i32
    %c0_i32_1 = arith.constant 0 : i32
    return %c0_i32, %c0_i32_0 : i32, i32
  }
  func.func @transform_3(%arg0: i32) -> (i32, i32) {
    %c0_i32 = arith.constant 0 : i32
    %c0_i32_0 = arith.constant 0 : i32
    return %arg0, %c0_i32 : i32, i32
  }
}

</mosaic_0001>

<llo_original>
// kernel: embedded_patches.1
$region0: #{embedded_patches.1}
  #allocation0 [shape = 'u32[]', space=smem, size = 0x4, offset = 0x4, fixed_abs, tag = 'smem constant byte address 0x4 - core index']
  #allocation1 [shape = 'u32[144,128]{1,0:T(1,128)}', space=vmem, size = 0x12000, scoped, tag = 'internal scratch']
  %s0 = inlined_call_operand.vmem [shape: bf16[8,256], index: 0, kind: input, shape index: {}]
  %s1 = inlined_call_operand.vmem [shape: bf16[256,768], index: 1, kind: input, shape index: {}]
  %s2 = inlined_call_operand.vmem [shape: f32[1,768], index: 2, kind: input, shape index: {}]
  %s3 = inlined_call_operand.vmem [shape: f32[8,768], index: 3, kind: output, shape index: {}]
  %s4 = sld [smem:[#allocation0]]
  $region22: #{embedded_patches.1} parent=0
    _
  %s6 = ssub.s32 1, %s4
  %s7 = scalar_select 0, %s6, %s4
  // Predicated region
  $region2: #{embedded_patches.1} parent=0 // pred_check
    _
  $region3: #{embedded_patches.1} parent=0 // pred_check_branch
    %9 = sbr.rel (0) target = $region5
  $region4: #{embedded_patches.1} parent=0 // pred_region
    _
  $region5: #{embedded_patches.1} parent=0 // pred_fallthru
    _
  // Predicated region
  $region6: #{embedded_patches.1} parent=0 // pred_check
    _
  $region7: #{embedded_patches.1} parent=0 // pred_check_branch
    %11 = sbr.rel (0) target = $region9
  $region8: #{embedded_patches.1} parent=0 // pred_region
    _
  $region9: #{embedded_patches.1} parent=0 // pred_fallthru
    _
  // Predicated region
  $region10: #{embedded_patches.1} parent=0 // pred_check
    _
  $region11: #{embedded_patches.1} parent=0 // pred_check_branch
    %13 = sbr.rel (0) target = $region13
  $region12: #{embedded_patches.1} parent=0 // pred_region
    _
  $region13: #{embedded_patches.1} parent=0 // pred_fallthru
    _
  %v14 = vld [vmem:[%s0] sm:$0xff]
  %v15 = vld [vmem:[%s1] sm:$0xff]
  %v16 = vld [vmem:[%s1 + $0x8] sm:$0xff]
  %v17 = vld [vmem:[%s1 + $0x10] sm:$0xff]
  %v18 = vld [vmem:[%s1 + $0x18] sm:$0xff]
  %v19 = vld [vmem:[%s1 + $0x20] sm:$0xff]
  %v20 = vld [vmem:[%s1 + $0x28] sm:$0xff]
  %v21 = vld [vmem:[%s1 + $0x30] sm:$0xff]
  %v22 = vld [vmem:[%s1 + $0x38] sm:$0xff]
  %v23 = vld [vmem:[%s1 + $0x40] sm:$0xff]
  %v24 = vld [vmem:[%s1 + $0x48] sm:$0xff]
  %v25 = vld [vmem:[%s1 + $0x50] sm:$0xff]
  %v26 = vld [vmem:[%s1 + $0x58] sm:$0xff]
  %v27 = vld [vmem:[%s1 + $0x60] sm:$0xff]
  %v28 = vld [vmem:[%s1 + $0x68] sm:$0xff]
  %v29 = vld [vmem:[%s1 + $0x70] sm:$0xff]
  %v30 = vld [vmem:[%s1 + $0x78] sm:$0xff]
  %v31 = vld [vmem:[%s1 + $0x80] sm:$0xff]
  %v32 = vld [vmem:[%s1 + $0x88] sm:$0xff]
  %v33 = vld [vmem:[%s1 + $0x90] sm:$0xff]
  %v34 = vld [vmem:[%s1 + $0x98] sm:$0xff]
  %v35 = vld [vmem:[%s1 + $0xa0] sm:$0xff]
  %v36 = vld [vmem:[%s1 + $0xa8] sm:$0xff]
  %v37 = vld [vmem:[%s1 + $0xb0] sm:$0xff]
  %v38 = vld [vmem:[%s1 + $0xb8] sm:$0xff]
  %v39 = vld [vmem:[%s1 + $0xc0] sm:$0xff]
  %v40 = vld [vmem:[%s1 + $0xc8] sm:$0xff]
  %v41 = vld [vmem:[%s1 + $0xd0] sm:$0xff]
  %v42 = vld [vmem:[%s1 + $0xd8] sm:$0xff]
  %v43 = vld [vmem:[%s1 + $0xe0] sm:$0xff]
  %v44 = vld [vmem:[%s1 + $0xe8] sm:$0xff]
  %v45 = vld [vmem:[%s1 + $0xf0] sm:$0xff]
  %v46 = vld [vmem:[%s1 + $0xf8] sm:$0xff]
  %v47 = vld [vmem:[%s1 + $0x100] sm:$0xff]
  %v48 = vld [vmem:[%s1 + $0x108] sm:$0xff]
  %v49 = vld [vmem:[%s1 + $0x110] sm:$0xff]
  %v50 = vld [vmem:[%s1 + $0x118] sm:$0xff]
  %v51 = vld [vmem:[%s1 + $0x120] sm:$0xff]
  %v52 = vld [vmem:[%s1 + $0x128] sm:$0xff]
  %v53 = vld [vmem:[%s1 + $0x130] sm:$0xff]
  %v54 = vld [vmem:[%s1 + $0x138] sm:$0xff]
  %v55 = vld [vmem:[%s1 + $0x140] sm:$0xff]
  %v56 = vld [vmem:[%s1 + $0x148] sm:$0xff]
  %v57 = vld [vmem:[%s1 + $0x150] sm:$0xff]
  %v58 = vld [vmem:[%s1 + $0x158] sm:$0xff]
  %v59 = vld [vmem:[%s1 + $0x160] sm:$0xff]
  %v60 = vld [vmem:[%s1 + $0x168] sm:$0xff]
  %v61 = vld [vmem:[%s1 + $0x170] sm:$0xff]
  %v62 = vld [vmem:[%s1 + $0x178] sm:$0xff]
  %v63 = vld [vmem:[%s1 + $0x180] sm:$0xff]
  %v64 = vld [vmem:[%s1 + $0x188] sm:$0xff]
  %v65 = vld [vmem:[%s1 + $0x190] sm:$0xff]
  %v66 = vld [vmem:[%s1 + $0x198] sm:$0xff]
  %v67 = vld [vmem:[%s1 + $0x1a0] sm:$0xff]
  %v68 = vld [vmem:[%s1 + $0x1a8] sm:$0xff]
  %v69 = vld [vmem:[%s1 + $0x1b0] sm:$0xff]
  %v70 = vld [vmem:[%s1 + $0x1b8] sm:$0xff]
  %v71 = vld [vmem:[%s1 + $0x1c0] sm:$0xff]
  %v72 = vld [vmem:[%s1 + $0x1c8] sm:$0xff]
  %v73 = vld [vmem:[%s1 + $0x1d0] sm:$0xff]
  %v74 = vld [vmem:[%s1 + $0x1d8] sm:$0xff]
  %v75 = vld [vmem:[%s1 + $0x1e0] sm:$0xff]
  %v76 = vld [vmem:[%s1 + $0x1e8] sm:$0xff]
  %v77 = vld [vmem:[%s1 + $0x1f0] sm:$0xff]
  %v78 = vld [vmem:[%s1 + $0x1f8] sm:$0xff]
  %v79 = vld [vmem:[%s1 + $0x200] sm:$0xff]
  %v80 = vld [vmem:[%s1 + $0x208] sm:$0xff]
  %v81 = vld [vmem:[%s1 + $0x210] sm:$0xff]
  %v82 = vld [vmem:[%s1 + $0x218] sm:$0xff]
  %v83 = vld [vmem:[%s1 + $0x220] sm:$0xff]
  %v84 = vld [vmem:[%s1 + $0x228] sm:$0xff]
  %v85 = vld [vmem:[%s1 + $0x230] sm:$0xff]
  %v86 = vld [vmem:[%s1 + $0x238] sm:$0xff]
  %v87 = vld [vmem:[%s1 + $0x240] sm:$0xff]
  %v88 = vld [vmem:[%s1 + $0x248] sm:$0xff]
  %v89 = vld [vmem:[%s1 + $0x250] sm:$0xff]
  %v90 = vld [vmem:[%s1 + $0x258] sm:$0xff]
  %v91 = vld [vmem:[%s1 + $0x260] sm:$0xff]
  %v92 = vld [vmem:[%s1 + $0x268] sm:$0xff]
  %v93 = vld [vmem:[%s1 + $0x270] sm:$0xff]
  %v94 = vld [vmem:[%s1 + $0x278] sm:$0xff]
  %v95 = vld [vmem:[%s1 + $0x280] sm:$0xff]
  %v96 = vld [vmem:[%s1 + $0x288] sm:$0xff]
  %v97 = vld [vmem:[%s1 + $0x290] sm:$0xff]
  %v98 = vld [vmem:[%s1 + $0x298] sm:$0xff]
  %v99 = vld [vmem:[%s1 + $0x2a0] sm:$0xff]
  %v100 = vld [vmem:[%s1 + $0x2a8] sm:$0xff]
  %v101 = vld [vmem:[%s1 + $0x2b0] sm:$0xff]
  %v102 = vld [vmem:[%s1 + $0x2b8] sm:$0xff]
  %v103 = vld [vmem:[%s1 + $0x2c0] sm:$0xff]
  %v104 = vld [vmem:[%s1 + $0x2c8] sm:$0xff]
  %v105 = vld [vmem:[%s1 + $0x2d0] sm:$0xff]
  %v106 = vld [vmem:[%s1 + $0x2d8] sm:$0xff]
  %v107 = vld [vmem:[%s1 + $0x2e0] sm:$0xff]
  %v108 = vld [vmem:[%s1 + $0x2e8] sm:$0xff]
  %v109 = vld [vmem:[%s1 + $0x2f0] sm:$0xff]
  %v110 = vld [vmem:[%s1 + $0x2f8] sm:$0xff]
  %v111 = vld [vmem:[%s2] sm:$0x3f]
  %v113 = vlaneseq
  %v114 = vshrl.u32 %v113, 7
  %v115 = vsub.s32 0, %v114
  %v116 = vrot.slane %v111, %v115
  %v117 = vlaneseq
  %v118 = vshrl.u32 %v117, 7
  %v119 = vsub.s32 1, %v118
  %v120 = vrot.slane %v111, %v119
  %v121 = vlaneseq
  %v122 = vshrl.u32 %v121, 7
  %v123 = vsub.s32 2, %v122
  %v124 = vrot.slane %v111, %v123
  %v125 = vlaneseq
  %v126 = vshrl.u32 %v125, 7
  %v127 = vsub.s32 3, %v126
  %v128 = vrot.slane %v111, %v127
  %v129 = vlaneseq
  %v130 = vshrl.u32 %v129, 7
  %v131 = vsub.s32 4, %v130
  %v132 = vrot.slane %v111, %v131
  %v133 = vlaneseq
  %v134 = vshrl.u32 %v133, 7
  %v135 = vsub.s32 5, %v134
  %v136 = vrot.slane %v111, %v135
  %v144 = vunpack.c.l.b16 %v14
  %v145 = vunpack.c.h.b16 %v14
  %v146 = vpack.c.b16 %v144, %v144
  %v147 = vpack.c.b16 %v145, %v145
  %v246 = vunpack.c.l.b16 %v15
  %v247 = vunpack.c.h.b16 %v15
  %v248 = vunpack.c.l.b16 %v16
  %v249 = vunpack.c.h.b16 %v16
  %v250 = vunpack.c.l.b16 %v17
  %v251 = vunpack.c.h.b16 %v17
  %v252 = vunpack.c.l.b16 %v18
  %v253 = vunpack.c.h.b16 %v18
  %v254 = vunpack.c.l.b16 %v19
  %v255 = vunpack.c.h.b16 %v19
  %v256 = vunpack.c.l.b16 %v20
  %v257 = vunpack.c.h.b16 %v20
  %v258 = vunpack.c.l.b16 %v21
  %v259 = vunpack.c.h.b16 %v21
  %v260 = vunpack.c.l.b16 %v22
  %v261 = vunpack.c.h.b16 %v22
  %v262 = vunpack.c.l.b16 %v23
  %v263 = vunpack.c.h.b16 %v23
  %v264 = vunpack.c.l.b16 %v24
  %v265 = vunpack.c.h.b16 %v24
  %v266 = vunpack.c.l.b16 %v25
  %v267 = vunpack.c.h.b16 %v25
  %v268 = vunpack.c.l.b16 %v26
  %v269 = vunpack.c.h.b16 %v26
  %v270 = vunpack.c.l.b16 %v27
  %v271 = vunpack.c.h.b16 %v27
  %v272 = vunpack.c.l.b16 %v28
  %v273 = vunpack.c.h.b16 %v28
  %v274 = vunpack.c.l.b16 %v29
  %v275 = vunpack.c.h.b16 %v29
  %v276 = vunpack.c.l.b16 %v30
  %v277 = vunpack.c.h.b16 %v30
  %v278 = vunpack.c.l.b16 %v31
  %v279 = vunpack.c.h.b16 %v31
  %v280 = vunpack.c.l.b16 %v32
  %v281 = vunpack.c.h.b16 %v32
  %v282 = vunpack.c.l.b16 %v33
  %v283 = vunpack.c.h.b16 %v33
  %v284 = vunpack.c.l.b16 %v34
  %v285 = vunpack.c.h.b16 %v34
  %v286 = vunpack.c.l.b16 %v35
  %v287 = vunpack.c.h.b16 %v35
  %v288 = vunpack.c.l.b16 %v36
  %v289 = vunpack.c.h.b16 %v36
  %v290 = vunpack.c.l.b16 %v37
  %v291 = vunpack.c.h.b16 %v37
  %v292 = vunpack.c.l.b16 %v38
  %v293 = vunpack.c.h.b16 %v38
  %v294 = vunpack.c.l.b16 %v39
  %v295 = vunpack.c.h.b16 %v39
  %v296 = vunpack.c.l.b16 %v40
  %v297 = vunpack.c.h.b16 %v40
  %v298 = vunpack.c.l.b16 %v41
  %v299 = vunpack.c.h.b16 %v41
  %v300 = vunpack.c.l.b16 %v42
  %v301 = vunpack.c.h.b16 %v42
  %v302 = vunpack.c.l.b16 %v43
  %v303 = vunpack.c.h.b16 %v43
  %v304 = vunpack.c.l.b16 %v44
  %v305 = vunpack.c.h.b16 %v44
  %v306 = vunpack.c.l.b16 %v45
  %v307 = vunpack.c.h.b16 %v45
  %v308 = vunpack.c.l.b16 %v46
  %v309 = vunpack.c.h.b16 %v46
  %v310 = vunpack.c.l.b16 %v47
  %v311 = vunpack.c.h.b16 %v47
  %v312 = vunpack.c.l.b16 %v48
  %v313 = vunpack.c.h.b16 %v48
  %v314 = vunpack.c.l.b16 %v49
  %v315 = vunpack.c.h.b16 %v49
  %v316 = vunpack.c.l.b16 %v50
  %v317 = vunpack.c.h.b16 %v50
  %v318 = vunpack.c.l.b16 %v51
  %v319 = vunpack.c.h.b16 %v51
  %v320 = vunpack.c.l.b16 %v52
  %v321 = vunpack.c.h.b16 %v52
  %v322 = vunpack.c.l.b16 %v53
  %v323 = vunpack.c.h.b16 %v53
  %v324 = vunpack.c.l.b16 %v54
  %v325 = vunpack.c.h.b16 %v54
  %v326 = vunpack.c.l.b16 %v55
  %v327 = vunpack.c.h.b16 %v55
  %v328 = vunpack.c.l.b16 %v56
  %v329 = vunpack.c.h.b16 %v56
  %v330 = vunpack.c.l.b16 %v57
  %v331 = vunpack.c.h.b16 %v57
  %v332 = vunpack.c.l.b16 %v58
  %v333 = vunpack.c.h.b16 %v58
  %v334 = vunpack.c.l.b16 %v59
  %v335 = vunpack.c.h.b16 %v59
  %v336 = vunpack.c.l.b16 %v60
  %v337 = vunpack.c.h.b16 %v60
  %v338 = vunpack.c.l.b16 %v61
  %v339 = vunpack.c.h.b16 %v61
  %v340 = vunpack.c.l.b16 %v62
  %v341 = vunpack.c.h.b16 %v62
  %v342 = vunpack.c.l.b16 %v63
  %v343 = vunpack.c.h.b16 %v63
  %v344 = vunpack.c.l.b16 %v64
  %v345 = vunpack.c.h.b16 %v64
  %v346 = vunpack.c.l.b16 %v65
  %v347 = vunpack.c.h.b16 %v65
  %v348 = vunpack.c.l.b16 %v66
  %v349 = vunpack.c.h.b16 %v66
  %v350 = vunpack.c.l.b16 %v67
  %v351 = vunpack.c.h.b16 %v67
  %v352 = vunpack.c.l.b16 %v68
  %v353 = vunpack.c.h.b16 %v68
  %v354 = vunpack.c.l.b16 %v69
  %v355 = vunpack.c.h.b16 %v69
  %v356 = vunpack.c.l.b16 %v70
  %v357 = vunpack.c.h.b16 %v70
  %v358 = vunpack.c.l.b16 %v71
  %v359 = vunpack.c.h.b16 %v71
  %v360 = vunpack.c.l.b16 %v72
  %v361 = vunpack.c.h.b16 %v72
  %v362 = vunpack.c.l.b16 %v73
  %v363 = vunpack.c.h.b16 %v73
  %v364 = vunpack.c.l.b16 %v74
  %v365 = vunpack.c.h.b16 %v74
  %v366 = vunpack.c.l.b16 %v75
  %v367 = vunpack.c.h.b16 %v75
  %v368 = vunpack.c.l.b16 %v76
  %v369 = vunpack.c.h.b16 %v76
  %v370 = vunpack.c.l.b16 %v77
  %v371 = vunpack.c.h.b16 %v77
  %v372 = vunpack.c.l.b16 %v78
  %v373 = vunpack.c.h.b16 %v78
  %v374 = vunpack.c.l.b16 %v79
  %v375 = vunpack.c.h.b16 %v79
  %v376 = vunpack.c.l.b16 %v80
  %v377 = vunpack.c.h.b16 %v80
  %v378 = vunpack.c.l.b16 %v81
  %v379 = vunpack.c.h.b16 %v81
  %v380 = vunpack.c.l.b16 %v82
  %v381 = vunpack.c.h.b16 %v82
  %v382 = vunpack.c.l.b16 %v83
  %v383 = vunpack.c.h.b16 %v83
  %v384 = vunpack.c.l.b16 %v84
  %v385 = vunpack.c.h.b16 %v84
  %v386 = vunpack.c.l.b16 %v85
  %v387 = vunpack.c.h.b16 %v85
  %v388 = vunpack.c.l.b16 %v86
  %v389 = vunpack.c.h.b16 %v86
  %v390 = vunpack.c.l.b16 %v87
  %v391 = vunpack.c.h.b16 %v87
  %v392 = vunpack.c.l.b16 %v88
  %v393 = vunpack.c.h.b16 %v88
  %v394 = vunpack.c.l.b16 %v89
  %v395 = vunpack.c.h.b16 %v89
  %v396 = vunpack.c.l.b16 %v90
  %v397 = vunpack.c.h.b16 %v90
  %v398 = vunpack.c.l.b16 %v91
  %v399 = vunpack.c.h.b16 %v91
  %v400 = vunpack.c.l.b16 %v92
  %v401 = vunpack.c.h.b16 %v92
  %v402 = vunpack.c.l.b16 %v93
  %v403 = vunpack.c.h.b16 %v93
  %v404 = vunpack.c.l.b16 %v94
  %v405 = vunpack.c.h.b16 %v94
  %v406 = vunpack.c.l.b16 %v95
  %v407 = vunpack.c.h.b16 %v95
  %v408 = vunpack.c.l.b16 %v96
  %v409 = vunpack.c.h.b16 %v96
  %v410 = vunpack.c.l.b16 %v97
  %v411 = vunpack.c.h.b16 %v97
  %v412 = vunpack.c.l.b16 %v98
  %v413 = vunpack.c.h.b16 %v98
  %v414 = vunpack.c.l.b16 %v99
  %v415 = vunpack.c.h.b16 %v99
  %v416 = vunpack.c.l.b16 %v100
  %v417 = vunpack.c.h.b16 %v100
  %v418 = vunpack.c.l.b16 %v101
  %v419 = vunpack.c.h.b16 %v101
  %v420 = vunpack.c.l.b16 %v102
  %v421 = vunpack.c.h.b16 %v102
  %v422 = vunpack.c.l.b16 %v103
  %v423 = vunpack.c.h.b16 %v103
  %v424 = vunpack.c.l.b16 %v104
  %v425 = vunpack.c.h.b16 %v104
  %v426 = vunpack.c.l.b16 %v105
  %v427 = vunpack.c.h.b16 %v105
  %v428 = vunpack.c.l.b16 %v106
  %v429 = vunpack.c.h.b16 %v106
  %v430 = vunpack.c.l.b16 %v107
  %v431 = vunpack.c.h.b16 %v107
  %v432 = vunpack.c.l.b16 %v108
  %v433 = vunpack.c.h.b16 %v108
  %v434 = vunpack.c.l.b16 %v109
  %v435 = vunpack.c.h.b16 %v109
  %v436 = vunpack.c.l.b16 %v110
  %v437 = vunpack.c.h.b16 %v110
  %v438 = vpack.c.b16 %v252, %v246
  %v439 = vpack.c.b16 %v253, %v247
  %v440 = vpack.c.b16 %v254, %v248
  %v441 = vpack.c.b16 %v255, %v249
  %v442 = vpack.c.b16 %v256, %v250
  %v443 = vpack.c.b16 %v257, %v251
  %v444 = vpack.c.b16 %v264, %v258
  %v445 = vpack.c.b16 %v265, %v259
  %v446 = vpack.c.b16 %v266, %v260
  %v447 = vpack.c.b16 %v267, %v261
  %v448 = vpack.c.b16 %v268, %v262
  %v449 = vpack.c.b16 %v269, %v263
  %v450 = vpack.c.b16 %v276, %v270
  %v451 = vpack.c.b16 %v277, %v271
  %v452 = vpack.c.b16 %v278, %v272
  %v453 = vpack.c.b16 %v279, %v273
  %v454 = vpack.c.b16 %v280, %v274
  %v455 = vpack.c.b16 %v281, %v275
  %v456 = vpack.c.b16 %v288, %v282
  %v457 = vpack.c.b16 %v289, %v283
  %v458 = vpack.c.b16 %v290, %v284
  %v459 = vpack.c.b16 %v291, %v285
  %v460 = vpack.c.b16 %v292, %v286
  %v461 = vpack.c.b16 %v293, %v287
  %v462 = vpack.c.b16 %v300, %v294
  %v463 = vpack.c.b16 %v301, %v295
  %v464 = vpack.c.b16 %v302, %v296
  %v465 = vpack.c.b16 %v303, %v297
  %v466 = vpack.c.b16 %v304, %v298
  %v467 = vpack.c.b16 %v305, %v299
  %v468 = vpack.c.b16 %v312, %v306
  %v469 = vpack.c.b16 %v313, %v307
  %v470 = vpack.c.b16 %v314, %v308
  %v471 = vpack.c.b16 %v315, %v309
  %v472 = vpack.c.b16 %v316, %v310
  %v473 = vpack.c.b16 %v317, %v311
  %v474 = vpack.c.b16 %v324, %v318
  %v475 = vpack.c.b16 %v325, %v319
  %v476 = vpack.c.b16 %v326, %v320
  %v477 = vpack.c.b16 %v327, %v321
  %v478 = vpack.c.b16 %v328, %v322
  %v479 = vpack.c.b16 %v329, %v323
  %v480 = vpack.c.b16 %v336, %v330
  %v481 = vpack.c.b16 %v337, %v331
  %v482 = vpack.c.b16 %v338, %v332
  %v483 = vpack.c.b16 %v339, %v333
  %v484 = vpack.c.b16 %v340, %v334
  %v485 = vpack.c.b16 %v341, %v335
  %v486 = vpack.c.b16 %v348, %v342
  %v487 = vpack.c.b16 %v349, %v343
  %v488 = vpack.c.b16 %v350, %v344
  %v489 = vpack.c.b16 %v351, %v345
  %v490 = vpack.c.b16 %v352, %v346
  %v491 = vpack.c.b16 %v353, %v347
  %v492 = vpack.c.b16 %v360, %v354
  %v493 = vpack.c.b16 %v361, %v355
  %v494 = vpack.c.b16 %v362, %v356
  %v495 = vpack.c.b16 %v363, %v357
  %v496 = vpack.c.b16 %v364, %v358
  %v497 = vpack.c.b16 %v365, %v359
  %v498 = vpack.c.b16 %v372, %v366
  %v499 = vpack.c.b16 %v373, %v367
  %v500 = vpack.c.b16 %v374, %v368
  %v501 = vpack.c.b16 %v375, %v369
  %v502 = vpack.c.b16 %v376, %v370
  %v503 = vpack.c.b16 %v377, %v371
  %v504 = vpack.c.b16 %v384, %v378
  %v505 = vpack.c.b16 %v385, %v379
  %v506 = vpack.c.b16 %v386, %v380
  %v507 = vpack.c.b16 %v387, %v381
  %v508 = vpack.c.b16 %v388, %v382
  %v509 = vpack.c.b16 %v389, %v383
  %v510 = vpack.c.b16 %v396, %v390
  %v511 = vpack.c.b16 %v397, %v391
  %v512 = vpack.c.b16 %v398, %v392
  %v513 = vpack.c.b16 %v399, %v393
  %v514 = vpack.c.b16 %v400, %v394
  %v515 = vpack.c.b16 %v401, %v395
  %v516 = vpack.c.b16 %v408, %v402
  %v517 = vpack.c.b16 %v409, %v403
  %v518 = vpack.c.b16 %v410, %v404
  %v519 = vpack.c.b16 %v411, %v405
  %v520 = vpack.c.b16 %v412, %v406
  %v521 = vpack.c.b16 %v413, %v407
  %v522 = vpack.c.b16 %v420, %v414
  %v523 = vpack.c.b16 %v421, %v415
  %v524 = vpack.c.b16 %v422, %v416
  %v525 = vpack.c.b16 %v423, %v417
  %v526 = vpack.c.b16 %v424, %v418
  %v527 = vpack.c.b16 %v425, %v419
  %v528 = vpack.c.b16 %v432, %v426
  %v529 = vpack.c.b16 %v433, %v427
  %v530 = vpack.c.b16 %v434, %v428
  %v531 = vpack.c.b16 %v435, %v429
  %v532 = vpack.c.b16 %v436, %v430
  %v533 = vpack.c.b16 %v437, %v431
  %630 = vmatprep.subr.bf16.mxu0 %v439
  %631 = vmatpush1.bf16.msra.mxu0 %v438
  %632 = vmatprep.subr.bf16.mxu0 %v445
  %633 = vmatpush1.bf16.msra.mxu0 %v444
  %634 = vmatprep.subr.bf16.mxu0 %v451
  %635 = vmatpush1.bf16.msra.mxu0 %v450
  %636 = vmatprep.subr.bf16.mxu0 %v457
  %637 = vmatpush1.bf16.msra.mxu0 %v456
  %638 = vmatprep.subr.bf16.mxu0 %v463
  %639 = vmatpush1.bf16.msra.mxu0 %v462
  %640 = vmatprep.subr.bf16.mxu0 %v469
  %641 = vmatpush1.bf16.msra.mxu0 %v468
  %642 = vmatprep.subr.bf16.mxu0 %v475
  %643 = vmatpush1.bf16.msra.mxu0 %v474
  %644 = vmatprep.subr.bf16.mxu0 %v481
  %645 = vmatpush1.bf16.msra.mxu0 %v480
  %646 = vmatprep.subr.bf16.mxu0 %v487
  %647 = vmatpush1.bf16.msra.mxu0 %v486
  %648 = vmatprep.subr.bf16.mxu0 %v493
  %649 = vmatpush1.bf16.msra.mxu0 %v492
  %650 = vmatprep.subr.bf16.mxu0 %v499
  %651 = vmatpush1.bf16.msra.mxu0 %v498
  %652 = vmatprep.subr.bf16.mxu0 %v505
  %653 = vmatpush1.bf16.msra.mxu0 %v504
  %654 = vmatprep.subr.bf16.mxu0 %v511
  %655 = vmatpush1.bf16.msra.mxu0 %v510
  %656 = vmatprep.subr.bf16.mxu0 %v517
  %657 = vmatpush1.bf16.msra.mxu0 %v516
  %658 = vmatprep.subr.bf16.mxu0 %v523
  %659 = vmatpush1.bf16.msra.mxu0 %v522
  %660 = vmatprep.subr.bf16.mxu0 %v529
  %661 = vmatpush1.bf16.msra.mxu0 %v528
  %662 = vmatprep.mubr.bf16.mxu0 %v147
  %663 = vmatmul.mubr.bf16.gmra.mrb[0].mxu0 %v146
  %v664 = vpop.f32.mrb[0].mxu0
  %v665 = vadd.f32 %v116, %v664
  %v666 = vpop.f32.mrb[0].mxu0
  %v667 = vadd.f32 %v120, %v666
  %v668 = vpop.f32.mrb[0].mxu0
  %v669 = vpop.f32.mrb[0].mxu0
  %670 = vdwg.mxu0
  %671 = vmatprep.subr.bf16.mxu0 %v441
  %672 = vmatpush1.bf16.msra.mxu0 %v440
  %673 = vmatprep.subr.bf16.mxu0 %v447
  %674 = vmatpush1.bf16.msra.mxu0 %v446
  %675 = vmatprep.subr.bf16.mxu0 %v453
  %676 = vmatpush1.bf16.msra.mxu0 %v452
  %677 = vmatprep.subr.bf16.mxu0 %v459
  %678 = vmatpush1.bf16.msra.mxu0 %v458
  %679 = vmatprep.subr.bf16.mxu0 %v465
  %680 = vmatpush1.bf16.msra.mxu0 %v464
  %681 = vmatprep.subr.bf16.mxu0 %v471
  %682 = vmatpush1.bf16.msra.mxu0 %v470
  %683 = vmatprep.subr.bf16.mxu0 %v477
  %684 = vmatpush1.bf16.msra.mxu0 %v476
  %685 = vmatprep.subr.bf16.mxu0 %v483
  %686 = vmatpush1.bf16.msra.mxu0 %v482
  %687 = vmatprep.subr.bf16.mxu0 %v489
  %688 = vmatpush1.bf16.msra.mxu0 %v488
  %689 = vmatprep.subr.bf16.mxu0 %v495
  %690 = vmatpush1.bf16.msra.mxu0 %v494
  %691 = vmatprep.subr.bf16.mxu0 %v501
  %692 = vmatpush1.bf16.msra.mxu0 %v500
  %693 = vmatprep.subr.bf16.mxu0 %v507
  %694 = vmatpush1.bf16.msra.mxu0 %v506
  %695 = vmatprep.subr.bf16.mxu0 %v513
  %696 = vmatpush1.bf16.msra.mxu0 %v512
  %697 = vmatprep.subr.bf16.mxu0 %v519
  %698 = vmatpush1.bf16.msra.mxu0 %v518
  %699 = vmatprep.subr.bf16.mxu0 %v525
  %700 = vmatpush1.bf16.msra.mxu0 %v524
  %701 = vmatprep.subr.bf16.mxu0 %v531
  %702 = vmatpush1.bf16.msra.mxu0 %v530
  %703 = vmatprep.mubr.bf16.mxu0 %v147
  %704 = vmatmul.mubr.bf16.gmra.mrb[0].mxu0 %v146
  %v705 = vpop.f32.mrb[0].mxu0
  %v706 = vadd.f32 %v124, %v705
  %v707 = vpop.f32.mrb[0].mxu0
  %v708 = vadd.f32 %v128, %v707
  %v709 = vpop.f32.mrb[0].mxu0
  %v710 = vpop.f32.mrb[0].mxu0
  %711 = vdwg.mxu0
  %712 = vmatprep.subr.bf16.mxu0 %v443
  %713 = vmatpush1.bf16.msra.mxu0 %v442
  %714 = vmatprep.subr.bf16.mxu0 %v449
  %715 = vmatpush1.bf16.msra.mxu0 %v448
  %716 = vmatprep.subr.bf16.mxu0 %v455
  %717 = vmatpush1.bf16.msra.mxu0 %v454
  %718 = vmatprep.subr.bf16.mxu0 %v461
  %719 = vmatpush1.bf16.msra.mxu0 %v460
  %720 = vmatprep.subr.bf16.mxu0 %v467
  %721 = vmatpush1.bf16.msra.mxu0 %v466
  %722 = vmatprep.subr.bf16.mxu0 %v473
  %723 = vmatpush1.bf16.msra.mxu0 %v472
  %724 = vmatprep.subr.bf16.mxu0 %v479
  %725 = vmatpush1.bf16.msra.mxu0 %v478
  %726 = vmatprep.subr.bf16.mxu0 %v485
  %727 = vmatpush1.bf16.msra.mxu0 %v484
  %728 = vmatprep.subr.bf16.mxu0 %v491
  %729 = vmatpush1.bf16.msra.mxu0 %v490
  %730 = vmatprep.subr.bf16.mxu0 %v497
  %731 = vmatpush1.bf16.msra.mxu0 %v496
  %732 = vmatprep.subr.bf16.mxu0 %v503
  %733 = vmatpush1.bf16.msra.mxu0 %v502
  %734 = vmatprep.subr.bf16.mxu0 %v509
  %735 = vmatpush1.bf16.msra.mxu0 %v508
  %736 = vmatprep.subr.bf16.mxu0 %v515
  %737 = vmatpush1.bf16.msra.mxu0 %v514
  %738 = vmatprep.subr.bf16.mxu0 %v521
  %739 = vmatpush1.bf16.msra.mxu0 %v520
  %740 = vmatprep.subr.bf16.mxu0 %v527
  %741 = vmatpush1.bf16.msra.mxu0 %v526
  %742 = vmatprep.subr.bf16.mxu0 %v533
  %743 = vmatpush1.bf16.msra.mxu0 %v532
  %744 = vmatprep.mubr.bf16.mxu0 %v147
  %745 = vmatmul.mubr.bf16.gmra.mrb[0].mxu0 %v146
  %v746 = vpop.f32.mrb[0].mxu0
  %v747 = vadd.f32 %v132, %v746
  %v748 = vpop.f32.mrb[0].mxu0
  %v749 = vadd.f32 %v136, %v748
  %v750 = vpop.f32.mrb[0].mxu0
  %v751 = vpop.f32.mrb[0].mxu0
  %752 = vdwg.mxu0
  %753 = vst [vmem:[%s3] sm:$0xff] %v665
  %754 = vst [vmem:[%s3 + $0x8] sm:$0xff] %v667
  %755 = vst [vmem:[%s3 + $0x10] sm:$0xff] %v706
  %756 = vst [vmem:[%s3 + $0x18] sm:$0xff] %v708
  %757 = vst [vmem:[%s3 + $0x20] sm:$0xff] %v747
  %758 = vst [vmem:[%s3 + $0x28] sm:$0xff] %v749
  // Predicated region
  $region14: #{embedded_patches.1} parent=0 // pred_check
    _
  $region15: #{embedded_patches.1} parent=0 // pred_check_branch
    %760 = sbr.rel (0) target = $region17
  $region16: #{embedded_patches.1} parent=0 // pred_region
    _
  $region17: #{embedded_patches.1} parent=0 // pred_fallthru
    _
  // Predicated region
  $region18: #{embedded_patches.1} parent=0 // pred_check
    _
  $region19: #{embedded_patches.1} parent=0 // pred_check_branch
    %762 = sbr.rel (0) target = $region21
  $region20: #{embedded_patches.1} parent=0 // pred_region
    _
  $region21: #{embedded_patches.1} parent=0 // pred_fallthru
    _

</llo_original>
